<compile_context>
chip_gen: v5e
topology: v5e:2x2
jax: 0.10.0
libtpu: 0.0.40
codegen_flags: <defaults>
</compile_context>

<pallas_src>
import functools

import jax
import jax.numpy as jnp
from jax.experimental import pallas as pl
from jax.experimental.pallas import tpu as pltpu

HIDDEN = 50
LANE = 128


def _round_up(n, m):
    return ((n + m - 1) // m) * m


def _pad_to(a, shape):
    return jnp.pad(a, [(0, t - s) for s, t in zip(a.shape, shape)])


def _generator_kernel(x_ref, w1_ref, b1_ref, w2_ref, b2_ref, w3_ref, b3_ref, o_ref):
    """Whole MLP forward for one batch tile; all operands resident in VMEM."""
    # Cast x to the weight dtype in-kernel (free under the pipeline; no-op for f32).
    x = x_ref[...].astype(w1_ref.dtype)

    # Layer 1: Linear + LeakyReLU(0.1)  (f32 accumulation on the MXU)
    h1 = jnp.dot(x, w1_ref[...], preferred_element_type=jnp.float32) + b1_ref[...]
    h1 = jnp.maximum(h1, 0.1 * h1)  # single vmax per element

    # Layer 2: Linear + LeakyReLU(0.1)
    h2 = jnp.dot(h1.astype(w2_ref.dtype), w2_ref[...],
                 preferred_element_type=jnp.float32) + b2_ref[...]
    h2 = jnp.maximum(h2, 0.1 * h2)

    # Layer 3: Linear + Sigmoid  (EUP exp + approx EUP reciprocal)
    h3 = jnp.dot(h2.astype(w3_ref.dtype), w3_ref[...],
                 preferred_element_type=jnp.float32) + b3_ref[...]
    o_ref[...] = pl.reciprocal(1.0 + jnp.exp(-h3), approx=True).astype(o_ref.dtype)


def prepare_generator_params(params, use_bf16=False):
    """Pad params once to a lane-dense (multiple-of-128) layout; optionally cast
    weights to bf16 (recommended on v5e/v6e/v7x: bf16 MXU, f32 accumulation).
    Biases stay f32 (added after f32 accumulation). Call ONCE and reuse."""
    w1, b1, w2, b2, w3, b3 = params
    noise_dim, hidden = w1.shape
    data_dim = w3.shape[1]
    hp = _round_up(hidden, LANE)
    dp = _round_up(data_dim, LANE)
    wdt = jnp.bfloat16 if use_bf16 else jnp.float32

    w1p = _pad_to(w1, (noise_dim, hp)).astype(wdt)
    w2p = _pad_to(w2, (hp, hp)).astype(wdt)
    w3p = _pad_to(w3, (hp, dp)).astype(wdt)
    b1p = _pad_to(b1.reshape(1, -1), (1, hp)).astype(jnp.float32)
    b2p = _pad_to(b2.reshape(1, -1), (1, hp)).astype(jnp.float32)
    b3p = _pad_to(b3.reshape(1, -1), (1, dp)).astype(jnp.float32)
    return (w1p, b1p, w2p, b2p, w3p, b3p), data_dim


@functools.partial(jax.jit, static_argnames=("data_dim", "block_b", "out_dtype"))
def generator_forward(x, prepared_params, data_dim, block_b=1024,
                      out_dtype=jnp.float32):
    """x: (B, noise_dim) f32 -> (B, data_dim) out_dtype.
    `prepared_params` must come from prepare_generator_params (padded once)."""
    w1p, b1p, w2p, b2p, w3p, b3p = prepared_params
    B, noise_dim = x.shape
    dp = w3p.shape[1]

    # Batch tile: as large as block_b, but capped at ceil(B/2) so the grid has
    # at least 2 steps and the "parallel" batch axis can occupy both v7x TCs.
    half_b = _round_up(max(1, -(-B // 2)), 8)
    bb = max(8, min(_round_up(block_b, 8), half_b))
    Bp = _round_up(B, bb)
    if Bp != B:
        x = jnp.pad(x, ((0, Bp - B), (0, 0)))

    grid = (Bp // bb,)

    # Weights/biases: full-array, grid-invariant blocks (index_map always 0),
    # so the pipeline keeps them resident instead of re-fetching per step.
    def full(a):
        return pl.BlockSpec(a.shape, lambda i: (0,) * a.ndim)

    cp_kwargs = dict(dimension_semantics=("parallel",))
    if bb >= 2048:
        # Large tiles: f32 intermediates grow linearly with bb; raise the scoped
        # VMEM limit (still under v7x's 64 MiB physical VMEM).
        cp_kwargs["vmem_limit_bytes"] = 64 << 20

    out = pl.pallas_call(
        _generator_kernel,
        out_shape=jax.ShapeDtypeStruct((Bp, dp), out_dtype),
        grid_spec=pltpu.PrefetchScalarGridSpec(
            num_scalar_prefetch=0,
            grid=grid,
            in_specs=[
                pl.BlockSpec((bb, noise_dim), lambda i: (i, 0)),  # x tile
                full(w1p), full(b1p),
                full(w2p), full(b2p),
                full(w3p), full(b3p),
            ],
            out_specs=pl.BlockSpec((bb, dp), lambda i: (i, 0)),
        ),
        compiler_params=pltpu.CompilerParams(**cp_kwargs),
    )(x, w1p, b1p, w2p, b2p, w3p, b3p)

    return out[:B, :data_dim]


def init_generator_params(key, noise_dim, data_dimension):
    """Deterministic init mimicking PyTorch nn.Linear default (uniform +/- 1/sqrt(fan_in))."""
    ks = jax.random.split(key, 6)

    def linear(kw, kb, fan_in, fan_out):
        bound = 1.0 / jnp.sqrt(fan_in)
        w = jax.random.uniform(kw, (fan_in, fan_out), jnp.float32, -bound, bound)
        b = jax.random.uniform(kb, (1, fan_out), jnp.float32, -bound, bound)
        return w, b

    w1, b1 = linear(ks[0], ks[1], noise_dim, HIDDEN)
    w2, b2 = linear(ks[2], ks[3], HIDDEN, HIDDEN)
    w3, b3 = linear(ks[4], ks[5], HIDDEN, data_dimension)
    return (w1, b1, w2, b2, w3, b3)


def generator_reference(x, params):
    w1, b1, w2, b2, w3, b3 = params
    h = x @ w1 + b1
    h = jnp.where(h >= 0, h, 0.1 * h)
    h = h @ w2 + b2
    h = jnp.where(h >= 0, h, 0.1 * h)
    h = h @ w3 + b3
    return jax.nn.sigmoid(h)


if __name__ == "__main__":
    noise_dim = 32
    data_dimension = 16
    batch = 512

    key = jax.random.PRNGKey(0)
    k_params, k_x = jax.random.split(key)
    params = init_generator_params(k_params, noise_dim, data_dimension)
    x = jax.random.normal(k_x, (batch, noise_dim), dtype=jnp.float32)
    ref = generator_reference(x, params)

    # f32 path: params padded once; default tile is capped at ceil(B/2)=256 rows
    # -> grid=(2,), so both v7x TensorCores get work.
    prep_f32, data_dim = prepare_generator_params(params, use_bf16=False)
    out = jax.block_until_ready(generator_forward(x, prep_f32, data_dim))
    assert out.shape == (batch, data_dimension)
    assert jnp.allclose(out, ref, atol=5e-3, rtol=5e-3), "f32 Pallas output mismatch"

    # bf16 fast path (recommended on v5e/v6e/v7x): bf16 weights + in-kernel bf16
    # x cast + bf16 output (halves the dominant HBM write), f32 accumulation.
    prep_bf16, _ = prepare_generator_params(params, use_bf16=True)
    out_bf16 = jax.block_until_ready(
        generator_forward(x, prep_bf16, data_dim, out_dtype=jnp.bfloat16))
    assert jnp.allclose(out_bf16.astype(jnp.float32), ref, atol=3e-2, rtol=3e-2), \
        "bf16 Pallas output mismatch"

    print("KERNEL_OK")
</pallas_src>

<mosaic_0001>
module attributes {stable_mosaic.version = 11 : i64} {
  func.func @_generator_kernel(%arg0: i32, %arg1: memref<256x32xf32, #tpu.memory_space<vmem>>, %arg2: memref<32x128xf32, #tpu.memory_space<vmem>>, %arg3: memref<1x128xf32, #tpu.memory_space<vmem>>, %arg4: memref<128x128xf32, #tpu.memory_space<vmem>>, %arg5: memref<1x128xf32, #tpu.memory_space<vmem>>, %arg6: memref<128x128xf32, #tpu.memory_space<vmem>>, %arg7: memref<1x128xf32, #tpu.memory_space<vmem>>, %arg8: memref<256x128xf32, #tpu.memory_space<vmem>>) attributes {dimension_semantics = [#tpu.dimension_semantics<parallel>], iteration_bounds = array<i64: 2>, scalar_prefetch = 0 : i64, scratch_operands = 0 : i64, tpu.core_type = #tpu.core_type<tc>, window_params = [{transform_indices = @transform_0, window_bounds = array<i64: 256, 32>}, {pipeline_mode = #tpu.pipeline_mode<synchronous>, transform_indices = @transform_1, window_bounds = array<i64: 32, 128>}, {pipeline_mode = #tpu.pipeline_mode<synchronous>, transform_indices = @transform_2, window_bounds = array<i64: 1, 128>}, {pipeline_mode = #tpu.pipeline_mode<synchronous>, transform_indices = @transform_3, window_bounds = array<i64: 128, 128>}, {pipeline_mode = #tpu.pipeline_mode<synchronous>, transform_indices = @transform_4, window_bounds = array<i64: 1, 128>}, {pipeline_mode = #tpu.pipeline_mode<synchronous>, transform_indices = @transform_5, window_bounds = array<i64: 128, 128>}, {pipeline_mode = #tpu.pipeline_mode<synchronous>, transform_indices = @transform_6, window_bounds = array<i64: 1, 128>}, {transform_indices = @transform_7, window_bounds = array<i64: 256, 128>}]} {
    %c0 = arith.constant 0 : index
    %c0_0 = arith.constant 0 : index
    %0 = vector.load %arg1[%c0, %c0_0] : memref<256x32xf32, #tpu.memory_space<vmem>>, vector<256x32xf32>
    %c0_1 = arith.constant 0 : index
    %c0_2 = arith.constant 0 : index
    %1 = vector.load %arg2[%c0_1, %c0_2] : memref<32x128xf32, #tpu.memory_space<vmem>>, vector<32x128xf32>
    %cst = arith.constant dense<0.000000e+00> : vector<256x128xf32>
    %2 = tpu.matmul %0, %1, %cst {dimension_numbers = #tpu.dot_dimension_numbers<[1], [0], [0], [1], [0, 0, 1, 1], [], []>} : vector<256x32xf32>, vector<32x128xf32>, vector<256x128xf32> -> vector<256x128xf32>
    %c0_3 = arith.constant 0 : index
    %c0_4 = arith.constant 0 : index
    %3 = vector.load %arg3[%c0_3, %c0_4] : memref<1x128xf32, #tpu.memory_space<vmem>>, vector<1x128xf32>
    %4 = vector.broadcast %3 : vector<1x128xf32> to vector<256x128xf32>
    %5 = arith.addf %2, %4 : vector<256x128xf32>
    %cst_5 = arith.constant 1.000000e-01 : f32
    %6 = vector.broadcast %cst_5 : f32 to vector<256x128xf32>
    %7 = arith.mulf %6, %5 : vector<256x128xf32>
    %8 = arith.maximumf %5, %7 : vector<256x128xf32>
    %c0_6 = arith.constant 0 : index
    %c0_7 = arith.constant 0 : index
    %9 = vector.load %arg4[%c0_6, %c0_7] : memref<128x128xf32, #tpu.memory_space<vmem>>, vector<128x128xf32>
    %cst_8 = arith.constant dense<0.000000e+00> : vector<256x128xf32>
    %10 = tpu.matmul %8, %9, %cst_8 {dimension_numbers = #tpu.dot_dimension_numbers<[1], [0], [0], [1], [0, 0, 1, 1], [], []>} : vector<256x128xf32>, vector<128x128xf32>, vector<256x128xf32> -> vector<256x128xf32>
    %c0_9 = arith.constant 0 : index
    %c0_10 = arith.constant 0 : index
    %11 = vector.load %arg5[%c0_9, %c0_10] : memref<1x128xf32, #tpu.memory_space<vmem>>, vector<1x128xf32>
    %12 = vector.broadcast %11 : vector<1x128xf32> to vector<256x128xf32>
    %13 = arith.addf %10, %12 : vector<256x128xf32>
    %cst_11 = arith.constant 1.000000e-01 : f32
    %14 = vector.broadcast %cst_11 : f32 to vector<256x128xf32>
    %15 = arith.mulf %14, %13 : vector<256x128xf32>
    %16 = arith.maximumf %13, %15 : vector<256x128xf32>
    %c0_12 = arith.constant 0 : index
    %c0_13 = arith.constant 0 : index
    %17 = vector.load %arg6[%c0_12, %c0_13] : memref<128x128xf32, #tpu.memory_space<vmem>>, vector<128x128xf32>
    %cst_14 = arith.constant dense<0.000000e+00> : vector<256x128xf32>
    %18 = tpu.matmul %16, %17, %cst_14 {dimension_numbers = #tpu.dot_dimension_numbers<[1], [0], [0], [1], [0, 0, 1, 1], [], []>} : vector<256x128xf32>, vector<128x128xf32>, vector<256x128xf32> -> vector<256x128xf32>
    %c0_15 = arith.constant 0 : index
    %c0_16 = arith.constant 0 : index
    %19 = vector.load %arg7[%c0_15, %c0_16] : memref<1x128xf32, #tpu.memory_space<vmem>>, vector<1x128xf32>
    %20 = vector.broadcast %19 : vector<1x128xf32> to vector<256x128xf32>
    %21 = arith.addf %18, %20 : vector<256x128xf32>
    %cst_17 = arith.constant 0.000000e+00 : f32
    %22 = vector.broadcast %cst_17 : f32 to vector<256x128xf32>
    %23 = arith.subf %22, %21 : vector<256x128xf32>
    %24 = math.exp %23 : vector<256x128xf32>
    %cst_18 = arith.constant 1.000000e+00 : f32
    %25 = vector.broadcast %cst_18 : f32 to vector<256x128xf32>
    %26 = arith.addf %25, %24 : vector<256x128xf32>
    %27 = tpu.reciprocal %26 {approx = true} : vector<256x128xf32> -> vector<256x128xf32>
    %c0_19 = arith.constant 0 : index
    %c0_20 = arith.constant 0 : index
    %28 = vector.load %arg8[%c0_19, %c0_20] : memref<256x128xf32, #tpu.memory_space<vmem>>, vector<256x128xf32>
    tpu.vector_store %arg8[%c0_19, %c0_20], %27 {strides = array<i32>} : memref<256x128xf32, #tpu.memory_space<vmem>>, vector<256x128xf32>,
    return
  }
  func.func @transform_0(%arg0: i32) -> (i32, i32) {
    %c0_i32 = arith.constant 0 : i32
    %c0_i32_0 = arith.constant 0 : i32
    return %arg0, %c0_i32 : i32, i32
  }
  func.func @transform_1(%arg0: i32) -> (i32, i32) {
    %c0_i32 = arith.constant 0 : i32
    %c0_i32_0 = arith.constant 0 : i32
    %c0_i32_1 = arith.constant 0 : i32
    return %c0_i32, %c0_i32_0 : i32, i32
  }
  func.func @transform_2(%arg0: i32) -> (i32, i32) {
    %c0_i32 = arith.constant 0 : i32
    %c0_i32_0 = arith.constant 0 : i32
    %c0_i32_1 = arith.constant 0 : i32
    return %c0_i32, %c0_i32_0 : i32, i32
  }
  func.func @transform_3(%arg0: i32) -> (i32, i32) {
    %c0_i32 = arith.constant 0 : i32
    %c0_i32_0 = arith.constant 0 : i32
    %c0_i32_1 = arith.constant 0 : i32
    return %c0_i32, %c0_i32_0 : i32, i32
  }
  func.func @transform_4(%arg0: i32) -> (i32, i32) {
    %c0_i32 = arith.constant 0 : i32
    %c0_i32_0 = arith.constant 0 : i32
    %c0_i32_1 = arith.constant 0 : i32
    return %c0_i32, %c0_i32_0 : i32, i32
  }
  func.func @transform_5(%arg0: i32) -> (i32, i32) {
    %c0_i32 = arith.constant 0 : i32
    %c0_i32_0 = arith.constant 0 : i32
    %c0_i32_1 = arith.constant 0 : i32
    return %c0_i32, %c0_i32_0 : i32, i32
  }
  func.func @transform_6(%arg0: i32) -> (i32, i32) {
    %c0_i32 = arith.constant 0 : i32
    %c0_i32_0 = arith.constant 0 : i32
    %c0_i32_1 = arith.constant 0 : i32
    return %c0_i32, %c0_i32_0 : i32, i32
  }
  func.func @transform_7(%arg0: i32) -> (i32, i32) {
    %c0_i32 = arith.constant 0 : i32
    %c0_i32_0 = arith.constant 0 : i32
    return %arg0, %c0_i32 : i32, i32
  }
}

</mosaic_0001>

<llo_original>
// kernel: generator_forward.1
$region0: #{generator_forward.1}
  #allocation0 [shape = 'u32[]', space=smem, size = 0x4, offset = 0x4, fixed_abs, tag = 'smem constant byte address 0x4 - core index']
  #allocation1 [shape = 'u32[72,128]{1,0:T(1,128)}', space=vmem, size = 0x9000, scoped, tag = 'internal scratch']
  %s0 = inlined_call_operand.vmem [shape: f32[512,32], index: 0, kind: input, shape index: {}]
  %s1 = inlined_call_operand.vmem [shape: f32[32,128], index: 1, kind: input, shape index: {}]
  %s2 = inlined_call_operand.vmem [shape: f32[1,128], index: 2, kind: input, shape index: {}]
  %s3 = inlined_call_operand.vmem [shape: f32[128,128], index: 3, kind: input, shape index: {}]
  %s4 = inlined_call_operand.vmem [shape: f32[1,128], index: 4, kind: input, shape index: {}]
  %s5 = inlined_call_operand.vmem [shape: f32[128,128], index: 5, kind: input, shape index: {}]
  %s6 = inlined_call_operand.vmem [shape: f32[1,128], index: 6, kind: input, shape index: {}]
  %s7 = inlined_call_operand.vmem [shape: f32[512,128], index: 7, kind: output, shape index: {}]
  %s8 = sld [smem:[#allocation0]]
  $region61: #{generator_forward.1} parent=0
    _
  %s10 = ssub.s32 1, %s8
  %s11 = scalar_select 0, %s10, %s8
  loop: start=0, step=1, limit=4
  $region2: #{generator_forward.1} parent=0 // loop_pre_header
    _
  $region3: #{generator_forward.1} parent=0 // loop_header
    %s13 = sphi 0, %s17
    %p14 = scmp.ge.s32.totalorder %s13, 4
    %s23 = sphi 0, %s25
    %s26 = sphi 0, %s23
    %s27 = sphi 0, %s26
    %s43 = sphi 0, %s27
    %s47 = sphi 0, %s47
    %s49 = sphi 0, %s47
    %s50 = sphi 0, %s49
    %s64 = sphi 0, %s50
    %s68 = sphi 0, %s68
    %s70 = sphi 0, %s68
    %s71 = sphi 0, %s70
    %s85 = sphi 0, %s71
    %s89 = sphi 0, %s89
    %s91 = sphi 0, %s89
    %s92 = sphi 0, %s91
    %s106 = sphi 0, %s92
    %s110 = sphi 0, %s110
    %s112 = sphi 0, %s110
    %s113 = sphi 0, %s112
    %s127 = sphi 0, %s113
    %s131 = sphi 0, %s131
    %s133 = sphi 0, %s131
    %s134 = sphi 0, %s133
    %s148 = sphi 0, %s134
    %s152 = sphi 0, %s152
    %s154 = sphi 0, %s152
    %s155 = sphi 0, %s154
    %s169 = sphi 0, %s155
    %s175 = sphi 0, %s177
    %s178 = sphi 0, %s175
    %s179 = sphi 0, %s178
    %s195 = sphi 0, %s179
  $region4: #{generator_forward.1} parent=0 // loop_header_branch
    %16 = sbr.rel (%p14) target = $region8
  $region5: #{generator_forward.1} parent=0 // loop_body
    %s18 = ssub.s32 %s13, 1
    %s19 = ssub.s32 %s13, 2
    %s20 = sadd.s32 %s13, 1
    %s21 = ssub.s32 %s13, %s20
    %p22 = scmp.eq.s32.totalorder %s21, 0
    %s24 = sadd.s32 %s23, 1
    %s25 = scalar_select %p22, %s23, %s24
    %p28 = pneg %p22
    %p29 = scmp.eq.s32.totalorder %s13, 1
    %p30 = por %p28, %p29
    %p31 = scmp.ne.s32.totalorder %s23, %s26
    %p32 = scmp.eq.s32.totalorder %s13, 0
    %p33 = por %p31, %p32
    %p34 = scmp.ne.s32.totalorder %s23, %s26
    %p35 = scmp.eq.s32.totalorder %s18, 1
    %p36 = por %p34, %p35
    %p37 = scmp.ne.s32.totalorder %s26, %s27
    %p38 = scmp.eq.s32.totalorder %s18, 0
    %p39 = por %p37, %p38
    %p40 = scmp.ne.s32.totalorder %s26, %s27
    %p41 = scmp.eq.s32.totalorder %s19, 1
    %p42 = por %p40, %p41
    %p44 = scmp.ne.s32.totalorder %s27, %s43
    %p45 = scmp.eq.s32.totalorder %s19, 0
    %p46 = por %p44, %p45
    %s48 = sadd.s32 %s47, 1
    %p51 = scmp.eq.s32.totalorder %s13, 1
    %p52 = scmp.ne.s32.totalorder %s47, %s49
    %p53 = scmp.eq.s32.totalorder %s13, 0
    %p54 = por %p52, %p53
    %p55 = scmp.ne.s32.totalorder %s47, %s49
    %p56 = scmp.eq.s32.totalorder %s18, 1
    %p57 = por %p55, %p56
    %p58 = scmp.ne.s32.totalorder %s49, %s50
    %p59 = scmp.eq.s32.totalorder %s18, 0
    %p60 = por %p58, %p59
    %p61 = scmp.ne.s32.totalorder %s49, %s50
    %p62 = scmp.eq.s32.totalorder %s19, 1
    %p63 = por %p61, %p62
    %p65 = scmp.ne.s32.totalorder %s50, %s64
    %p66 = scmp.eq.s32.totalorder %s19, 0
    %p67 = por %p65, %p66
    %s69 = sadd.s32 %s68, 1
    %p72 = scmp.eq.s32.totalorder %s13, 1
    %p73 = scmp.ne.s32.totalorder %s68, %s70
    %p74 = scmp.eq.s32.totalorder %s13, 0
    %p75 = por %p73, %p74
    %p76 = scmp.ne.s32.totalorder %s68, %s70
    %p77 = scmp.eq.s32.totalorder %s18, 1
    %p78 = por %p76, %p77
    %p79 = scmp.ne.s32.totalorder %s70, %s71
    %p80 = scmp.eq.s32.totalorder %s18, 0
    %p81 = por %p79, %p80
    %p82 = scmp.ne.s32.totalorder %s70, %s71
    %p83 = scmp.eq.s32.totalorder %s19, 1
    %p84 = por %p82, %p83
    %p86 = scmp.ne.s32.totalorder %s71, %s85
    %p87 = scmp.eq.s32.totalorder %s19, 0
    %p88 = por %p86, %p87
    %s90 = sadd.s32 %s89, 1
    %p93 = scmp.eq.s32.totalorder %s13, 1
    %p94 = scmp.ne.s32.totalorder %s89, %s91
    %p95 = scmp.eq.s32.totalorder %s13, 0
    %p96 = por %p94, %p95
    %p97 = scmp.ne.s32.totalorder %s89, %s91
    %p98 = scmp.eq.s32.totalorder %s18, 1
    %p99 = por %p97, %p98
    %p100 = scmp.ne.s32.totalorder %s91, %s92
    %p101 = scmp.eq.s32.totalorder %s18, 0
    %p102 = por %p100, %p101
    %p103 = scmp.ne.s32.totalorder %s91, %s92
    %p104 = scmp.eq.s32.totalorder %s19, 1
    %p105 = por %p103, %p104
    %p107 = scmp.ne.s32.totalorder %s92, %s106
    %p108 = scmp.eq.s32.totalorder %s19, 0
    %p109 = por %p107, %p108
    %s111 = sadd.s32 %s110, 1
    %p114 = scmp.eq.s32.totalorder %s13, 1
    %p115 = scmp.ne.s32.totalorder %s110, %s112
    %p116 = scmp.eq.s32.totalorder %s13, 0
    %p117 = por %p115, %p116
    %p118 = scmp.ne.s32.totalorder %s110, %s112
    %p119 = scmp.eq.s32.totalorder %s18, 1
    %p120 = por %p118, %p119
    %p121 = scmp.ne.s32.totalorder %s112, %s113
    %p122 = scmp.eq.s32.totalorder %s18, 0
    %p123 = por %p121, %p122
    %p124 = scmp.ne.s32.totalorder %s112, %s113
    %p125 = scmp.eq.s32.totalorder %s19, 1
    %p126 = por %p124, %p125
    %p128 = scmp.ne.s32.totalorder %s113, %s127
    %p129 = scmp.eq.s32.totalorder %s19, 0
    %p130 = por %p128, %p129
    %s132 = sadd.s32 %s131, 1
    %p135 = scmp.eq.s32.totalorder %s13, 1
    %p136 = scmp.ne.s32.totalorder %s131, %s133
    %p137 = scmp.eq.s32.totalorder %s13, 0
    %p138 = por %p136, %p137
    %p139 = scmp.ne.s32.totalorder %s131, %s133
    %p140 = scmp.eq.s32.totalorder %s18, 1
    %p141 = por %p139, %p140
    %p142 = scmp.ne.s32.totalorder %s133, %s134
    %p143 = scmp.eq.s32.totalorder %s18, 0
    %p144 = por %p142, %p143
    %p145 = scmp.ne.s32.totalorder %s133, %s134
    %p146 = scmp.eq.s32.totalorder %s19, 1
    %p147 = por %p145, %p146
    %p149 = scmp.ne.s32.totalorder %s134, %s148
    %p150 = scmp.eq.s32.totalorder %s19, 0
    %p151 = por %p149, %p150
    %s153 = sadd.s32 %s152, 1
    %p156 = scmp.eq.s32.totalorder %s13, 1
    %p157 = scmp.ne.s32.totalorder %s152, %s154
    %p158 = scmp.eq.s32.totalorder %s13, 0
    %p159 = por %p157, %p158
    %p160 = scmp.ne.s32.totalorder %s152, %s154
    %p161 = scmp.eq.s32.totalorder %s18, 1
    %p162 = por %p160, %p161
    %p163 = scmp.ne.s32.totalorder %s154, %s155
    %p164 = scmp.eq.s32.totalorder %s18, 0
    %p165 = por %p163, %p164
    %p166 = scmp.ne.s32.totalorder %s154, %s155
    %p167 = scmp.eq.s32.totalorder %s19, 1
    %p168 = por %p166, %p167
    %p170 = scmp.ne.s32.totalorder %s155, %s169
    %p171 = scmp.eq.s32.totalorder %s19, 0
    %p172 = por %p170, %p171
    %s173 = ssub.s32 %s13, %s20
    %p174 = scmp.eq.s32.totalorder %s173, 0
    %s176 = sadd.s32 %s175, 1
    %s177 = scalar_select %p174, %s175, %s176
    %p180 = pneg %p174
    %p181 = scmp.eq.s32.totalorder %s13, 1
    %p182 = por %p180, %p181
    %p183 = scmp.ne.s32.totalorder %s175, %s178
    %p184 = scmp.eq.s32.totalorder %s13, 0
    %p185 = por %p183, %p184
    %p186 = scmp.ne.s32.totalorder %s175, %s178
    %p187 = scmp.eq.s32.totalorder %s18, 1
    %p188 = por %p186, %p187
    %p189 = scmp.ne.s32.totalorder %s178, %s179
    %p190 = scmp.eq.s32.totalorder %s18, 0
    %p191 = por %p189, %p190
    %p192 = scmp.ne.s32.totalorder %s178, %s179
    %p193 = scmp.eq.s32.totalorder %s19, 1
    %p194 = por %p192, %p193
    %p196 = scmp.ne.s32.totalorder %s179, %s195
    %p197 = scmp.eq.s32.totalorder %s19, 0
    %p198 = por %p196, %p197
    %p199 = scmp.le.s32.totalorder 1, %s13
    %p200 = scmp.lt.s32.totalorder %s13, 3
    %p201 = pnand %p199, %p200
    %p202 = pneg %p201
    // Predicated region
    $region9: #{generator_forward.1} parent=5 // pred_check
      _
    $region10: #{generator_forward.1} parent=5 // pred_check_branch
      %204 = sbr.rel (%p201) target = $region12
    $region11: #{generator_forward.1} parent=5 // pred_region
      %s205 = ssub.s32 %s13, 1
      // Predicated region
      $region13: #{generator_forward.1} parent=11 // pred_check
        %p206 = pneg %p60
      $region14: #{generator_forward.1} parent=11 // pred_check_branch
        %208 = sbr.rel (%p206) target = $region16
      $region15: #{generator_forward.1} parent=11 // pred_region
        _
      $region16: #{generator_forward.1} parent=11 // pred_fallthru
        _
      // Predicated region
      $region17: #{generator_forward.1} parent=11 // pred_check
        %p209 = pneg %p81
      $region18: #{generator_forward.1} parent=11 // pred_check_branch
        %211 = sbr.rel (%p209) target = $region20
      $region19: #{generator_forward.1} parent=11 // pred_region
        _
      $region20: #{generator_forward.1} parent=11 // pred_fallthru
        _
      // Predicated region
      $region21: #{generator_forward.1} parent=11 // pred_check
        %p212 = pneg %p102
      $region22: #{generator_forward.1} parent=11 // pred_check_branch
        %214 = sbr.rel (%p212) target = $region24
      $region23: #{generator_forward.1} parent=11 // pred_region
        _
      $region24: #{generator_forward.1} parent=11 // pred_fallthru
        _
      // Predicated region
      $region25: #{generator_forward.1} parent=11 // pred_check
        %p215 = pneg %p123
      $region26: #{generator_forward.1} parent=11 // pred_check_branch
        %217 = sbr.rel (%p215) target = $region28
      $region27: #{generator_forward.1} parent=11 // pred_region
        _
      $region28: #{generator_forward.1} parent=11 // pred_fallthru
        _
      // Predicated region
      $region29: #{generator_forward.1} parent=11 // pred_check
        %p218 = pneg %p144
      $region30: #{generator_forward.1} parent=11 // pred_check_branch
        %220 = sbr.rel (%p218) target = $region32
      $region31: #{generator_forward.1} parent=11 // pred_region
        _
      $region32: #{generator_forward.1} parent=11 // pred_fallthru
        _
      // Predicated region
      $region33: #{generator_forward.1} parent=11 // pred_check
        %p221 = pneg %p165
      $region34: #{generator_forward.1} parent=11 // pred_check_branch
        %223 = sbr.rel (%p221) target = $region36
      $region35: #{generator_forward.1} parent=11 // pred_region
        _
      $region36: #{generator_forward.1} parent=11 // pred_fallthru
        _
    $region12: #{generator_forward.1} parent=5 // pred_fallthru
      _
    %p224 = scmp.lt.s32.totalorder %s13, 2
    // Predicated region
    $region37: #{generator_forward.1} parent=5 // pred_check
      %p225 = pneg %p224
    $region38: #{generator_forward.1} parent=5 // pred_check_branch
      %227 = sbr.rel (%p225) target = $region40
    $region39: #{generator_forward.1} parent=5 // pred_region
      // Predicated region
      $region41: #{generator_forward.1} parent=39 // pred_check
        %p228 = pneg %p33
      $region42: #{generator_forward.1} parent=39 // pred_check_branch
        %230 = sbr.rel (%p228) target = $region44
      $region43: #{generator_forward.1} parent=39 // pred_region
        %s231 = smul.u32 32, %s13
        %p232 = scmp.lt.s32.totalorder %s231, 63
        %s233 = scalar_select %p232, %s231, 63
        %s234 = smul.addr %s233, 8
        %s235 = scalar_lea.vmem %s0, %s234
        %s236 = smul.u32 32, %s13
      $region44: #{generator_forward.1} parent=39 // pred_fallthru
        _
    $region40: #{generator_forward.1} parent=5 // pred_fallthru
      _
    %p237 = scmp.le.s32.totalorder 1, %s13
    %p238 = scmp.lt.s32.totalorder %s13, 3
    %p239 = pnand %p237, %p238
    %p240 = pneg %p239
    // Predicated region
    $region45: #{generator_forward.1} parent=5 // pred_check
      _
    $region46: #{generator_forward.1} parent=5 // pred_check_branch
      %242 = sbr.rel (%p239) target = $region48
    $region47: #{generator_forward.1} parent=5 // pred_region
      %s243 = ssub.s32 %s13, 1
      %s244 = smul.u32 32, %s18
      %p245 = scmp.lt.s32.totalorder %s244, 63
      %s246 = scalar_select %p245, %s244, 63
      %s247 = smul.addr %s246, 8
      %s248 = scalar_lea.vmem %s0, %s247
      %p249 = pneg %p39
      %p250 = pneg %p36
      %p251 = pneg %p60
      %p252 = pneg %p57
      %p253 = pneg %p81
      %p254 = pneg %p78
      %p255 = pneg %p102
      %p256 = pneg %p99
      %p257 = pneg %p123
      %p258 = pneg %p120
      %p259 = pneg %p144
      %p260 = pneg %p141
      %p261 = pneg %p165
      %p262 = pneg %p162
      %p263 = pneg %p191
      %p264 = pneg %p188
      %s265 = smul.u32 32, %s18
      %p266 = scmp.lt.s32.totalorder %s265, 63
      %s267 = scalar_select %p266, %s265, 63
      %s268 = smul.addr %s267, 8
      %s269 = scalar_lea.vmem %s7, %s268
      %s270 = smul.u32 32, %s18
      %p271 = scmp.lt.s32.totalorder %s270, 63
      %s272 = scalar_select %p271, %s270, 63
      %s273 = smul.addr %s272, 8
      %s274 = scalar_lea.vmem %s0, %s273
      %s275 = smul.u32 32, %s18
      %s276 = smul.u32 32, %s18
      %p277 = scmp.lt.s32.totalorder %s276, 63
      %s278 = scalar_select %p277, %s276, 63
      %s279 = smul.addr %s278, 8
      %s280 = scalar_lea.vmem %s7, %s279
      %s281 = smul.u32 32, %s18
      %v282 = vld [vmem:[%s274] sm:$0xff]
      %v283 = vld [vmem:[%s274 + $0x8] sm:$0xff]
      %v284 = vld [vmem:[%s274 + $0x10] sm:$0xff]
      %v285 = vld [vmem:[%s274 + $0x18] sm:$0xff]
      %v286 = vld [vmem:[%s274 + $0x20] sm:$0xff]
      %v287 = vld [vmem:[%s274 + $0x28] sm:$0xff]
      %v288 = vld [vmem:[%s274 + $0x30] sm:$0xff]
      %v289 = vld [vmem:[%s274 + $0x38] sm:$0xff]
      %v290 = vld [vmem:[%s274 + $0x40] sm:$0xff]
      %v291 = vld [vmem:[%s274 + $0x48] sm:$0xff]
      %v292 = vld [vmem:[%s274 + $0x50] sm:$0xff]
      %v293 = vld [vmem:[%s274 + $0x58] sm:$0xff]
      %v294 = vld [vmem:[%s274 + $0x60] sm:$0xff]
      %v295 = vld [vmem:[%s274 + $0x68] sm:$0xff]
      %v296 = vld [vmem:[%s274 + $0x70] sm:$0xff]
      %v297 = vld [vmem:[%s274 + $0x78] sm:$0xff]
      %v298 = vld [vmem:[%s274 + $0x80] sm:$0xff]
      %v299 = vld [vmem:[%s274 + $0x88] sm:$0xff]
      %v300 = vld [vmem:[%s274 + $0x90] sm:$0xff]
      %v301 = vld [vmem:[%s274 + $0x98] sm:$0xff]
      %v302 = vld [vmem:[%s274 + $0xa0] sm:$0xff]
      %v303 = vld [vmem:[%s274 + $0xa8] sm:$0xff]
      %v304 = vld [vmem:[%s274 + $0xb0] sm:$0xff]
      %v305 = vld [vmem:[%s274 + $0xb8] sm:$0xff]
      %v306 = vld [vmem:[%s274 + $0xc0] sm:$0xff]
      %v307 = vld [vmem:[%s274 + $0xc8] sm:$0xff]
      %v308 = vld [vmem:[%s274 + $0xd0] sm:$0xff]
      %v309 = vld [vmem:[%s274 + $0xd8] sm:$0xff]
      %v310 = vld [vmem:[%s274 + $0xe0] sm:$0xff]
      %v311 = vld [vmem:[%s274 + $0xe8] sm:$0xff]
      %v312 = vld [vmem:[%s274 + $0xf0] sm:$0xff]
      %v313 = vld [vmem:[%s274 + $0xf8] sm:$0xff]
      %v314 = vld [vmem:[%s1] sm:$0xff]
      %v315 = vld [vmem:[%s1 + $0x8] sm:$0xff]
      %v316 = vld [vmem:[%s1 + $0x10] sm:$0xff]
      %v317 = vld [vmem:[%s1 + $0x18] sm:$0xff]
      %v318 = vld [vmem:[%s2] sm:$0x1]
      %v320 = vperm.slane %v318, 0
      %vm322 = vcmask 261120
      %v324 = vsel %vm322, %v282, 0
      %v327 = vsel %vm322, %v283, 0
      %v330 = vsel %vm322, %v284, 0
      %v333 = vsel %vm322, %v285, 0
      %v336 = vsel %vm322, %v286, 0
      %v339 = vsel %vm322, %v287, 0
      %v342 = vsel %vm322, %v288, 0
      %v345 = vsel %vm322, %v289, 0
      %v348 = vsel %vm322, %v290, 0
      %v351 = vsel %vm322, %v291, 0
      %v354 = vsel %vm322, %v292, 0
      %v357 = vsel %vm322, %v293, 0
      %v360 = vsel %vm322, %v294, 0
      %v363 = vsel %vm322, %v295, 0
      %v366 = vsel %vm322, %v296, 0
      %v369 = vsel %vm322, %v297, 0
      %v372 = vsel %vm322, %v298, 0
      %v375 = vsel %vm322, %v299, 0
      %v378 = vsel %vm322, %v300, 0
      %v381 = vsel %vm322, %v301, 0
      %v384 = vsel %vm322, %v302, 0
      %v387 = vsel %vm322, %v303, 0
      %v390 = vsel %vm322, %v304, 0
      %v393 = vsel %vm322, %v305, 0
      %v396 = vsel %vm322, %v306, 0
      %v399 = vsel %vm322, %v307, 0
      %v402 = vsel %vm322, %v308, 0
      %v405 = vsel %vm322, %v309, 0
      %v408 = vsel %vm322, %v310, 0
      %v411 = vsel %vm322, %v311, 0
      %v414 = vsel %vm322, %v312, 0
      %v417 = vsel %vm322, %v313, 0
      %419 = vmatpush.msra.mxu0 0.0
      %420 = vmatpush.msra.mxu0 0.0
      %421 = vmatpush.msra.mxu0 0.0
      %422 = vmatpush.msra.mxu0 0.0
      %423 = vmatpush.msra.mxu0 0.0
      %424 = vmatpush.msra.mxu0 0.0
      %425 = vmatpush.msra.mxu0 0.0
      %426 = vmatpush.msra.mxu0 0.0
      %427 = vmatpush.msra.mxu0 0.0
      %428 = vmatpush.msra.mxu0 0.0
      %429 = vmatpush.msra.mxu0 0.0
      %430 = vmatpush.msra.mxu0 0.0
      %431 = vmatpush.msra.mxu0 %v317
      %432 = vmatpush.msra.mxu0 %v316
      %433 = vmatpush.msra.mxu0 %v315
      %434 = vmatpush.msra.mxu0 %v314
      %435 = vmatmul.f32.gmra.mxu0 %v324
      %v436 = vpop.f32.mrf.mxu0
      %v437 = vadd.f32 %v320, %v436
      %438 = vmatmul.f32.gmra.mxu0 %v327
      %v439 = vpop.f32.mrf.mxu0
      %v440 = vadd.f32 %v320, %v439
      %441 = vmatmul.f32.gmra.mxu0 %v330
      %v442 = vpop.f32.mrf.mxu0
      %v443 = vadd.f32 %v320, %v442
      %444 = vmatmul.f32.gmra.mxu0 %v333
      %v445 = vpop.f32.mrf.mxu0
      %v446 = vadd.f32 %v320, %v445
      %447 = vmatmul.f32.gmra.mxu0 %v336
      %v448 = vpop.f32.mrf.mxu0
      %v449 = vadd.f32 %v320, %v448
      %450 = vmatmul.f32.gmra.mxu0 %v339
      %v451 = vpop.f32.mrf.mxu0
      %v452 = vadd.f32 %v320, %v451
      %453 = vmatmul.f32.gmra.mxu0 %v342
      %v454 = vpop.f32.mrf.mxu0
      %v455 = vadd.f32 %v320, %v454
      %456 = vmatmul.f32.gmra.mxu0 %v345
      %v457 = vpop.f32.mrf.mxu0
      %v458 = vadd.f32 %v320, %v457
      %459 = vmatmul.f32.gmra.mxu0 %v348
      %v460 = vpop.f32.mrf.mxu0
      %v461 = vadd.f32 %v320, %v460
      %462 = vmatmul.f32.gmra.mxu0 %v351
      %v463 = vpop.f32.mrf.mxu0
      %v464 = vadd.f32 %v320, %v463
      %465 = vmatmul.f32.gmra.mxu0 %v354
      %v466 = vpop.f32.mrf.mxu0
      %v467 = vadd.f32 %v320, %v466
      %468 = vmatmul.f32.gmra.mxu0 %v357
      %v469 = vpop.f32.mrf.mxu0
      %v470 = vadd.f32 %v320, %v469
      %471 = vmatmul.f32.gmra.mxu0 %v360
      %v472 = vpop.f32.mrf.mxu0
      %v473 = vadd.f32 %v320, %v472
      %474 = vmatmul.f32.gmra.mxu0 %v363
      %v475 = vpop.f32.mrf.mxu0
      %v476 = vadd.f32 %v320, %v475
      %477 = vmatmul.f32.gmra.mxu0 %v366
      %v478 = vpop.f32.mrf.mxu0
      %v479 = vadd.f32 %v320, %v478
      %480 = vmatmul.f32.gmra.mxu0 %v369
      %v481 = vpop.f32.mrf.mxu0
      %v482 = vadd.f32 %v320, %v481
      %483 = vmatmul.f32.gmra.mxu0 %v372
      %v484 = vpop.f32.mrf.mxu0
      %v485 = vadd.f32 %v320, %v484
      %486 = vmatmul.f32.gmra.mxu0 %v375
      %v487 = vpop.f32.mrf.mxu0
      %v488 = vadd.f32 %v320, %v487
      %489 = vmatmul.f32.gmra.mxu0 %v378
      %v490 = vpop.f32.mrf.mxu0
      %v491 = vadd.f32 %v320, %v490
      %492 = vmatmul.f32.gmra.mxu0 %v381
      %v493 = vpop.f32.mrf.mxu0
      %v494 = vadd.f32 %v320, %v493
      %495 = vmatmul.f32.gmra.mxu0 %v384
      %v496 = vpop.f32.mrf.mxu0
      %v497 = vadd.f32 %v320, %v496
      %498 = vmatmul.f32.gmra.mxu0 %v387
      %v499 = vpop.f32.mrf.mxu0
      %v500 = vadd.f32 %v320, %v499
      %501 = vmatmul.f32.gmra.mxu0 %v390
      %v502 = vpop.f32.mrf.mxu0
      %v503 = vadd.f32 %v320, %v502
      %504 = vmatmul.f32.gmra.mxu0 %v393
      %v505 = vpop.f32.mrf.mxu0
      %v506 = vadd.f32 %v320, %v505
      %507 = vmatmul.f32.gmra.mxu0 %v396
      %v508 = vpop.f32.mrf.mxu0
      %v509 = vadd.f32 %v320, %v508
      %510 = vmatmul.f32.gmra.mxu0 %v399
      %v511 = vpop.f32.mrf.mxu0
      %v512 = vadd.f32 %v320, %v511
      %513 = vmatmul.f32.gmra.mxu0 %v402
      %v514 = vpop.f32.mrf.mxu0
      %v515 = vadd.f32 %v320, %v514
      %516 = vmatmul.f32.gmra.mxu0 %v405
      %v517 = vpop.f32.mrf.mxu0
      %v518 = vadd.f32 %v320, %v517
      %519 = vmatmul.f32.gmra.mxu0 %v408
      %v520 = vpop.f32.mrf.mxu0
      %v521 = vadd.f32 %v320, %v520
      %522 = vmatmul.f32.gmra.mxu0 %v411
      %v523 = vpop.f32.mrf.mxu0
      %v524 = vadd.f32 %v320, %v523
      %525 = vmatmul.f32.gmra.mxu0 %v414
      %v526 = vpop.f32.mrf.mxu0
      %v527 = vadd.f32 %v320, %v526
      %528 = vmatmul.f32.gmra.mxu0 %v417
      %v529 = vpop.f32.mrf.mxu0
      %v530 = vadd.f32 %v320, %v529
      %531 = vdwg.mxu0
      %v532 = vmul.f32 %v437, 0.1
      %v533 = vmul.f32 %v440, 0.1
      %v534 = vmul.f32 %v443, 0.1
      %v535 = vmul.f32 %v446, 0.1
      %v536 = vmul.f32 %v449, 0.1
      %v537 = vmul.f32 %v452, 0.1
      %v538 = vmul.f32 %v455, 0.1
      %v539 = vmul.f32 %v458, 0.1
      %v540 = vmul.f32 %v461, 0.1
      %v541 = vmul.f32 %v464, 0.1
      %v542 = vmul.f32 %v467, 0.1
      %v543 = vmul.f32 %v470, 0.1
      %v544 = vmul.f32 %v473, 0.1
      %v545 = vmul.f32 %v476, 0.1
      %v546 = vmul.f32 %v479, 0.1
      %v547 = vmul.f32 %v482, 0.1
      %v548 = vmul.f32 %v485, 0.1
      %v549 = vmul.f32 %v488, 0.1
      %v550 = vmul.f32 %v491, 0.1
      %v551 = vmul.f32 %v494, 0.1
      %v552 = vmul.f32 %v497, 0.1
      %v553 = vmul.f32 %v500, 0.1
      %v554 = vmul.f32 %v503, 0.1
      %v555 = vmul.f32 %v506, 0.1
      %v556 = vmul.f32 %v509, 0.1
      %v557 = vmul.f32 %v512, 0.1
      %v558 = vmul.f32 %v515, 0.1
      %v559 = vmul.f32 %v518, 0.1
      %v560 = vmul.f32 %v521, 0.1
      %v561 = vmul.f32 %v524, 0.1
      %v562 = vmul.f32 %v527, 0.1
      %v563 = vmul.f32 %v530, 0.1
      %v564 = vmax.f32 %v437, %v532
      %v565 = vmax.f32 %v440, %v533
      %v566 = vmax.f32 %v443, %v534
      %v567 = vmax.f32 %v446, %v535
      %v568 = vmax.f32 %v449, %v536
      %v569 = vmax.f32 %v452, %v537
      %v570 = vmax.f32 %v455, %v538
      %v571 = vmax.f32 %v458, %v539
      %v572 = vmax.f32 %v461, %v540
      %v573 = vmax.f32 %v464, %v541
      %v574 = vmax.f32 %v467, %v542
      %v575 = vmax.f32 %v470, %v543
      %v576 = vmax.f32 %v473, %v544
      %v577 = vmax.f32 %v476, %v545
      %v578 = vmax.f32 %v479, %v546
      %v579 = vmax.f32 %v482, %v547
      %v580 = vmax.f32 %v485, %v548
      %v581 = vmax.f32 %v488, %v549
      %v582 = vmax.f32 %v491, %v550
      %v583 = vmax.f32 %v494, %v551
      %v584 = vmax.f32 %v497, %v552
      %v585 = vmax.f32 %v500, %v553
      %v586 = vmax.f32 %v503, %v554
      %v587 = vmax.f32 %v506, %v555
      %v588 = vmax.f32 %v509, %v556
      %v589 = vmax.f32 %v512, %v557
      %v590 = vmax.f32 %v515, %v558
      %v591 = vmax.f32 %v518, %v559
      %v592 = vmax.f32 %v521, %v560
      %v593 = vmax.f32 %v524, %v561
      %v594 = vmax.f32 %v527, %v562
      %v595 = vmax.f32 %v530, %v563
      %v596 = vld [vmem:[%s3] sm:$0xff]
      %v597 = vld [vmem:[%s3 + $0x8] sm:$0xff]
      %v598 = vld [vmem:[%s3 + $0x10] sm:$0xff]
      %v599 = vld [vmem:[%s3 + $0x18] sm:$0xff]
      %v600 = vld [vmem:[%s3 + $0x20] sm:$0xff]
      %v601 = vld [vmem:[%s3 + $0x28] sm:$0xff]
      %v602 = vld [vmem:[%s3 + $0x30] sm:$0xff]
      %v603 = vld [vmem:[%s3 + $0x38] sm:$0xff]
      %v604 = vld [vmem:[%s3 + $0x40] sm:$0xff]
      %v605 = vld [vmem:[%s3 + $0x48] sm:$0xff]
      %v606 = vld [vmem:[%s3 + $0x50] sm:$0xff]
      %v607 = vld [vmem:[%s3 + $0x58] sm:$0xff]
      %v608 = vld [vmem:[%s3 + $0x60] sm:$0xff]
      %v609 = vld [vmem:[%s3 + $0x68] sm:$0xff]
      %v610 = vld [vmem:[%s3 + $0x70] sm:$0xff]
      %v611 = vld [vmem:[%s3 + $0x78] sm:$0xff]
      %v612 = vld [vmem:[%s4] sm:$0x1]
      %v614 = vperm.slane %v612, 0
      %616 = vmatpush.msra.mxu0 %v611
      %617 = vmatpush.msra.mxu0 %v610
      %618 = vmatpush.msra.mxu0 %v609
      %619 = vmatpush.msra.mxu0 %v608
      %620 = vmatpush.msra.mxu0 %v607
      %621 = vmatpush.msra.mxu0 %v606
      %622 = vmatpush.msra.mxu0 %v605
      %623 = vmatpush.msra.mxu0 %v604
      %624 = vmatpush.msra.mxu0 %v603
      %625 = vmatpush.msra.mxu0 %v602
      %626 = vmatpush.msra.mxu0 %v601
      %627 = vmatpush.msra.mxu0 %v600
      %628 = vmatpush.msra.mxu0 %v599
      %629 = vmatpush.msra.mxu0 %v598
      %630 = vmatpush.msra.mxu0 %v597
      %631 = vmatpush.msra.mxu0 %v596
      %632 = vmatmul.f32.gmra.mxu0 %v564
      %v633 = vpop.f32.mrf.mxu0
      %v634 = vadd.f32 %v614, %v633
      %635 = vmatmul.f32.gmra.mxu0 %v565
      %v636 = vpop.f32.mrf.mxu0
      %v637 = vadd.f32 %v614, %v636
      %638 = vmatmul.f32.gmra.mxu0 %v566
      %v639 = vpop.f32.mrf.mxu0
      %v640 = vadd.f32 %v614, %v639
      %641 = vmatmul.f32.gmra.mxu0 %v567
      %v642 = vpop.f32.mrf.mxu0
      %v643 = vadd.f32 %v614, %v642
      %644 = vmatmul.f32.gmra.mxu0 %v568
      %v645 = vpop.f32.mrf.mxu0
      %v646 = vadd.f32 %v614, %v645
      %647 = vmatmul.f32.gmra.mxu0 %v569
      %v648 = vpop.f32.mrf.mxu0
      %v649 = vadd.f32 %v614, %v648
      %650 = vmatmul.f32.gmra.mxu0 %v570
      %v651 = vpop.f32.mrf.mxu0
      %v652 = vadd.f32 %v614, %v651
      %653 = vmatmul.f32.gmra.mxu0 %v571
      %v654 = vpop.f32.mrf.mxu0
      %v655 = vadd.f32 %v614, %v654
      %656 = vmatmul.f32.gmra.mxu0 %v572
      %v657 = vpop.f32.mrf.mxu0
      %v658 = vadd.f32 %v614, %v657
      %659 = vmatmul.f32.gmra.mxu0 %v573
      %v660 = vpop.f32.mrf.mxu0
      %v661 = vadd.f32 %v614, %v660
      %662 = vmatmul.f32.gmra.mxu0 %v574
      %v663 = vpop.f32.mrf.mxu0
      %v664 = vadd.f32 %v614, %v663
      %665 = vmatmul.f32.gmra.mxu0 %v575
      %v666 = vpop.f32.mrf.mxu0
      %v667 = vadd.f32 %v614, %v666
      %668 = vmatmul.f32.gmra.mxu0 %v576
      %v669 = vpop.f32.mrf.mxu0
      %v670 = vadd.f32 %v614, %v669
      %671 = vmatmul.f32.gmra.mxu0 %v577
      %v672 = vpop.f32.mrf.mxu0
      %v673 = vadd.f32 %v614, %v672
      %674 = vmatmul.f32.gmra.mxu0 %v578
      %v675 = vpop.f32.mrf.mxu0
      %v676 = vadd.f32 %v614, %v675
      %677 = vmatmul.f32.gmra.mxu0 %v579
      %v678 = vpop.f32.mrf.mxu0
      %v679 = vadd.f32 %v614, %v678
      %680 = vmatmul.f32.gmra.mxu0 %v580
      %v681 = vpop.f32.mrf.mxu0
      %v682 = vadd.f32 %v614, %v681
      %683 = vmatmul.f32.gmra.mxu0 %v581
      %v684 = vpop.f32.mrf.mxu0
      %v685 = vadd.f32 %v614, %v684
      %686 = vmatmul.f32.gmra.mxu0 %v582
      %v687 = vpop.f32.mrf.mxu0
      %v688 = vadd.f32 %v614, %v687
      %689 = vmatmul.f32.gmra.mxu0 %v583
      %v690 = vpop.f32.mrf.mxu0
      %v691 = vadd.f32 %v614, %v690
      %692 = vmatmul.f32.gmra.mxu0 %v584
      %v693 = vpop.f32.mrf.mxu0
      %v694 = vadd.f32 %v614, %v693
      %695 = vmatmul.f32.gmra.mxu0 %v585
      %v696 = vpop.f32.mrf.mxu0
      %v697 = vadd.f32 %v614, %v696
      %698 = vmatmul.f32.gmra.mxu0 %v586
      %v699 = vpop.f32.mrf.mxu0
      %v700 = vadd.f32 %v614, %v699
      %701 = vmatmul.f32.gmra.mxu0 %v587
      %v702 = vpop.f32.mrf.mxu0
      %v703 = vadd.f32 %v614, %v702
      %704 = vmatmul.f32.gmra.mxu0 %v588
      %v705 = vpop.f32.mrf.mxu0
      %v706 = vadd.f32 %v614, %v705
      %707 = vmatmul.f32.gmra.mxu0 %v589
      %v708 = vpop.f32.mrf.mxu0
      %v709 = vadd.f32 %v614, %v708
      %710 = vmatmul.f32.gmra.mxu0 %v590
      %v711 = vpop.f32.mrf.mxu0
      %v712 = vadd.f32 %v614, %v711
      %713 = vmatmul.f32.gmra.mxu0 %v591
      %v714 = vpop.f32.mrf.mxu0
      %v715 = vadd.f32 %v614, %v714
      %716 = vmatmul.f32.gmra.mxu0 %v592
      %v717 = vpop.f32.mrf.mxu0
      %v718 = vadd.f32 %v614, %v717
      %719 = vmatmul.f32.gmra.mxu0 %v593
      %v720 = vpop.f32.mrf.mxu0
      %v721 = vadd.f32 %v614, %v720
      %722 = vmatmul.f32.gmra.mxu0 %v594
      %v723 = vpop.f32.mrf.mxu0
      %v724 = vadd.f32 %v614, %v723
      %725 = vmatmul.f32.gmra.mxu0 %v595
      %v726 = vpop.f32.mrf.mxu0
      %v727 = vadd.f32 %v614, %v726
      %728 = vdwg.mxu0
      %v729 = vmul.f32 %v634, 0.1
      %v730 = vmul.f32 %v637, 0.1
      %v731 = vmul.f32 %v640, 0.1
      %v732 = vmul.f32 %v643, 0.1
      %v733 = vmul.f32 %v646, 0.1
      %v734 = vmul.f32 %v649, 0.1
      %v735 = vmul.f32 %v652, 0.1
      %v736 = vmul.f32 %v655, 0.1
      %v737 = vmul.f32 %v658, 0.1
      %v738 = vmul.f32 %v661, 0.1
      %v739 = vmul.f32 %v664, 0.1
      %v740 = vmul.f32 %v667, 0.1
      %v741 = vmul.f32 %v670, 0.1
      %v742 = vmul.f32 %v673, 0.1
      %v743 = vmul.f32 %v676, 0.1
      %v744 = vmul.f32 %v679, 0.1
      %v745 = vmul.f32 %v682, 0.1
      %v746 = vmul.f32 %v685, 0.1
      %v747 = vmul.f32 %v688, 0.1
      %v748 = vmul.f32 %v691, 0.1
      %v749 = vmul.f32 %v694, 0.1
      %v750 = vmul.f32 %v697, 0.1
      %v751 = vmul.f32 %v700, 0.1
      %v752 = vmul.f32 %v703, 0.1
      %v753 = vmul.f32 %v706, 0.1
      %v754 = vmul.f32 %v709, 0.1
      %v755 = vmul.f32 %v712, 0.1
      %v756 = vmul.f32 %v715, 0.1
      %v757 = vmul.f32 %v718, 0.1
      %v758 = vmul.f32 %v721, 0.1
      %v759 = vmul.f32 %v724, 0.1
      %v760 = vmul.f32 %v727, 0.1
      %v761 = vmax.f32 %v634, %v729
      %v762 = vmax.f32 %v637, %v730
      %v763 = vmax.f32 %v640, %v731
      %v764 = vmax.f32 %v643, %v732
      %v765 = vmax.f32 %v646, %v733
      %v766 = vmax.f32 %v649, %v734
      %v767 = vmax.f32 %v652, %v735
      %v768 = vmax.f32 %v655, %v736
      %v769 = vmax.f32 %v658, %v737
      %v770 = vmax.f32 %v661, %v738
      %v771 = vmax.f32 %v664, %v739
      %v772 = vmax.f32 %v667, %v740
      %v773 = vmax.f32 %v670, %v741
      %v774 = vmax.f32 %v673, %v742
      %v775 = vmax.f32 %v676, %v743
      %v776 = vmax.f32 %v679, %v744
      %v777 = vmax.f32 %v682, %v745
      %v778 = vmax.f32 %v685, %v746
      %v779 = vmax.f32 %v688, %v747
      %v780 = vmax.f32 %v691, %v748
      %v781 = vmax.f32 %v694, %v749
      %v782 = vmax.f32 %v697, %v750
      %v783 = vmax.f32 %v700, %v751
      %v784 = vmax.f32 %v703, %v752
      %v785 = vmax.f32 %v706, %v753
      %v786 = vmax.f32 %v709, %v754
      %v787 = vmax.f32 %v712, %v755
      %v788 = vmax.f32 %v715, %v756
      %v789 = vmax.f32 %v718, %v757
      %v790 = vmax.f32 %v721, %v758
      %v791 = vmax.f32 %v724, %v759
      %v792 = vmax.f32 %v727, %v760
      %v793 = vld [vmem:[%s5] sm:$0xff]
      %v794 = vld [vmem:[%s5 + $0x8] sm:$0xff]
      %v795 = vld [vmem:[%s5 + $0x10] sm:$0xff]
      %v796 = vld [vmem:[%s5 + $0x18] sm:$0xff]
      %v797 = vld [vmem:[%s5 + $0x20] sm:$0xff]
      %v798 = vld [vmem:[%s5 + $0x28] sm:$0xff]
      %v799 = vld [vmem:[%s5 + $0x30] sm:$0xff]
      %v800 = vld [vmem:[%s5 + $0x38] sm:$0xff]
      %v801 = vld [vmem:[%s5 + $0x40] sm:$0xff]
      %v802 = vld [vmem:[%s5 + $0x48] sm:$0xff]
      %v803 = vld [vmem:[%s5 + $0x50] sm:$0xff]
      %v804 = vld [vmem:[%s5 + $0x58] sm:$0xff]
      %v805 = vld [vmem:[%s5 + $0x60] sm:$0xff]
      %v806 = vld [vmem:[%s5 + $0x68] sm:$0xff]
      %v807 = vld [vmem:[%s5 + $0x70] sm:$0xff]
      %v808 = vld [vmem:[%s5 + $0x78] sm:$0xff]
      %v809 = vld [vmem:[%s6] sm:$0x1]
      %v811 = vperm.slane %v809, 0
      %813 = vmatpush.msra.mxu0 %v808
      %814 = vmatpush.msra.mxu0 %v807
      %815 = vmatpush.msra.mxu0 %v806
      %816 = vmatpush.msra.mxu0 %v805
      %817 = vmatpush.msra.mxu0 %v804
      %818 = vmatpush.msra.mxu0 %v803
      %819 = vmatpush.msra.mxu0 %v802
      %820 = vmatpush.msra.mxu0 %v801
      %821 = vmatpush.msra.mxu0 %v800
      %822 = vmatpush.msra.mxu0 %v799
      %823 = vmatpush.msra.mxu0 %v798
      %824 = vmatpush.msra.mxu0 %v797
      %825 = vmatpush.msra.mxu0 %v796
      %826 = vmatpush.msra.mxu0 %v795
      %827 = vmatpush.msra.mxu0 %v794
      %828 = vmatpush.msra.mxu0 %v793
      %829 = vmatmul.f32.gmra.mxu0 %v761
      %v830 = vpop.f32.mrf.mxu0
      %v831 = vadd.f32 %v811, %v830
      %832 = vmatmul.f32.gmra.mxu0 %v762
      %v833 = vpop.f32.mrf.mxu0
      %v834 = vadd.f32 %v811, %v833
      %835 = vmatmul.f32.gmra.mxu0 %v763
      %v836 = vpop.f32.mrf.mxu0
      %v837 = vadd.f32 %v811, %v836
      %838 = vmatmul.f32.gmra.mxu0 %v764
      %v839 = vpop.f32.mrf.mxu0
      %v840 = vadd.f32 %v811, %v839
      %841 = vmatmul.f32.gmra.mxu0 %v765
      %v842 = vpop.f32.mrf.mxu0
      %v843 = vadd.f32 %v811, %v842
      %844 = vmatmul.f32.gmra.mxu0 %v766
      %v845 = vpop.f32.mrf.mxu0
      %v846 = vadd.f32 %v811, %v845
      %847 = vmatmul.f32.gmra.mxu0 %v767
      %v848 = vpop.f32.mrf.mxu0
      %v849 = vadd.f32 %v811, %v848
      %850 = vmatmul.f32.gmra.mxu0 %v768
      %v851 = vpop.f32.mrf.mxu0
      %v852 = vadd.f32 %v811, %v851
      %853 = vmatmul.f32.gmra.mxu0 %v769
      %v854 = vpop.f32.mrf.mxu0
      %v855 = vadd.f32 %v811, %v854
      %856 = vmatmul.f32.gmra.mxu0 %v770
      %v857 = vpop.f32.mrf.mxu0
      %v858 = vadd.f32 %v811, %v857
      %859 = vmatmul.f32.gmra.mxu0 %v771
      %v860 = vpop.f32.mrf.mxu0
      %v861 = vadd.f32 %v811, %v860
      %862 = vmatmul.f32.gmra.mxu0 %v772
      %v863 = vpop.f32.mrf.mxu0
      %v864 = vadd.f32 %v811, %v863
      %865 = vmatmul.f32.gmra.mxu0 %v773
      %v866 = vpop.f32.mrf.mxu0
      %v867 = vadd.f32 %v811, %v866
      %868 = vmatmul.f32.gmra.mxu0 %v774
      %v869 = vpop.f32.mrf.mxu0
      %v870 = vadd.f32 %v811, %v869
      %871 = vmatmul.f32.gmra.mxu0 %v775
      %v872 = vpop.f32.mrf.mxu0
      %v873 = vadd.f32 %v811, %v872
      %874 = vmatmul.f32.gmra.mxu0 %v776
      %v875 = vpop.f32.mrf.mxu0
      %v876 = vadd.f32 %v811, %v875
      %877 = vmatmul.f32.gmra.mxu0 %v777
      %v878 = vpop.f32.mrf.mxu0
      %v879 = vadd.f32 %v811, %v878
      %880 = vmatmul.f32.gmra.mxu0 %v778
      %v881 = vpop.f32.mrf.mxu0
      %v882 = vadd.f32 %v811, %v881
      %883 = vmatmul.f32.gmra.mxu0 %v779
      %v884 = vpop.f32.mrf.mxu0
      %v885 = vadd.f32 %v811, %v884
      %886 = vmatmul.f32.gmra.mxu0 %v780
      %v887 = vpop.f32.mrf.mxu0
      %v888 = vadd.f32 %v811, %v887
      %889 = vmatmul.f32.gmra.mxu0 %v781
      %v890 = vpop.f32.mrf.mxu0
      %v891 = vadd.f32 %v811, %v890
      %892 = vmatmul.f32.gmra.mxu0 %v782
      %v893 = vpop.f32.mrf.mxu0
      %v894 = vadd.f32 %v811, %v893
      %895 = vmatmul.f32.gmra.mxu0 %v783
      %v896 = vpop.f32.mrf.mxu0
      %v897 = vadd.f32 %v811, %v896
      %898 = vmatmul.f32.gmra.mxu0 %v784
      %v899 = vpop.f32.mrf.mxu0
      %v900 = vadd.f32 %v811, %v899
      %901 = vmatmul.f32.gmra.mxu0 %v785
      %v902 = vpop.f32.mrf.mxu0
      %v903 = vadd.f32 %v811, %v902
      %904 = vmatmul.f32.gmra.mxu0 %v786
      %v905 = vpop.f32.mrf.mxu0
      %v906 = vadd.f32 %v811, %v905
      %907 = vmatmul.f32.gmra.mxu0 %v787
      %v908 = vpop.f32.mrf.mxu0
      %v909 = vadd.f32 %v811, %v908
      %910 = vmatmul.f32.gmra.mxu0 %v788
      %v911 = vpop.f32.mrf.mxu0
      %v912 = vadd.f32 %v811, %v911
      %913 = vmatmul.f32.gmra.mxu0 %v789
      %v914 = vpop.f32.mrf.mxu0
      %v915 = vadd.f32 %v811, %v914
      %916 = vmatmul.f32.gmra.mxu0 %v790
      %v917 = vpop.f32.mrf.mxu0
      %v918 = vadd.f32 %v811, %v917
      %919 = vmatmul.f32.gmra.mxu0 %v791
      %v920 = vpop.f32.mrf.mxu0
      %v921 = vadd.f32 %v811, %v920
      %922 = vmatmul.f32.gmra.mxu0 %v792
      %v923 = vpop.f32.mrf.mxu0
      %v924 = vadd.f32 %v811, %v923
      %925 = vdwg.mxu0
      %v926 = vsub.f32 0.0, %v831
      %v927 = vsub.f32 0.0, %v834
      %v928 = vsub.f32 0.0, %v837
      %v929 = vsub.f32 0.0, %v840
      %v930 = vsub.f32 0.0, %v843
      %v931 = vsub.f32 0.0, %v846
      %v932 = vsub.f32 0.0, %v849
      %v933 = vsub.f32 0.0, %v852
      %v934 = vsub.f32 0.0, %v855
      %v935 = vsub.f32 0.0, %v858
      %v936 = vsub.f32 0.0, %v861
      %v937 = vsub.f32 0.0, %v864
      %v938 = vsub.f32 0.0, %v867
      %v939 = vsub.f32 0.0, %v870
      %v940 = vsub.f32 0.0, %v873
      %v941 = vsub.f32 0.0, %v876
      %v942 = vsub.f32 0.0, %v879
      %v943 = vsub.f32 0.0, %v882
      %v944 = vsub.f32 0.0, %v885
      %v945 = vsub.f32 0.0, %v888
      %v946 = vsub.f32 0.0, %v891
      %v947 = vsub.f32 0.0, %v894
      %v948 = vsub.f32 0.0, %v897
      %v949 = vsub.f32 0.0, %v900
      %v950 = vsub.f32 0.0, %v903
      %v951 = vsub.f32 0.0, %v906
      %v952 = vsub.f32 0.0, %v909
      %v953 = vsub.f32 0.0, %v912
      %v954 = vsub.f32 0.0, %v915
      %v955 = vsub.f32 0.0, %v918
      %v956 = vsub.f32 0.0, %v921
      %v957 = vsub.f32 0.0, %v924
      %v958 = vmul.f32 %v926, 1.442695
      %v959 = vpow.pop %v958
      %v960 = vmul.f32 %v927, 1.442695
      %v961 = vpow.pop %v960
      %v962 = vmul.f32 %v928, 1.442695
      %v963 = vpow.pop %v962
      %v964 = vmul.f32 %v929, 1.442695
      %v965 = vpow.pop %v964
      %v966 = vmul.f32 %v930, 1.442695
      %v967 = vpow.pop %v966
      %v968 = vmul.f32 %v931, 1.442695
      %v969 = vpow.pop %v968
      %v970 = vmul.f32 %v932, 1.442695
      %v971 = vpow.pop %v970
      %v972 = vmul.f32 %v933, 1.442695
      %v973 = vpow.pop %v972
      %v974 = vmul.f32 %v934, 1.442695
      %v975 = vpow.pop %v974
      %v976 = vmul.f32 %v935, 1.442695
      %v977 = vpow.pop %v976
      %v978 = vmul.f32 %v936, 1.442695
      %v979 = vpow.pop %v978
      %v980 = vmul.f32 %v937, 1.442695
      %v981 = vpow.pop %v980
      %v982 = vmul.f32 %v938, 1.442695
      %v983 = vpow.pop %v982
      %v984 = vmul.f32 %v939, 1.442695
      %v985 = vpow.pop %v984
      %v986 = vmul.f32 %v940, 1.442695
      %v987 = vpow.pop %v986
      %v988 = vmul.f32 %v941, 1.442695
      %v989 = vpow.pop %v988
      %v990 = vmul.f32 %v942, 1.442695
      %v991 = vpow.pop %v990
      %v992 = vmul.f32 %v943, 1.442695
      %v993 = vpow.pop %v992
      %v994 = vmul.f32 %v944, 1.442695
      %v995 = vpow.pop %v994
      %v996 = vmul.f32 %v945, 1.442695
      %v997 = vpow.pop %v996
      %v998 = vmul.f32 %v946, 1.442695
      %v999 = vpow.pop %v998
      %v1000 = vmul.f32 %v947, 1.442695
      %v1001 = vpow.pop %v1000
      %v1002 = vmul.f32 %v948, 1.442695
      %v1003 = vpow.pop %v1002
      %v1004 = vmul.f32 %v949, 1.442695
      %v1005 = vpow.pop %v1004
      %v1006 = vmul.f32 %v950, 1.442695
      %v1007 = vpow.pop %v1006
      %v1008 = vmul.f32 %v951, 1.442695
      %v1009 = vpow.pop %v1008
      %v1010 = vmul.f32 %v952, 1.442695
      %v1011 = vpow.pop %v1010
      %v1012 = vmul.f32 %v953, 1.442695
      %v1013 = vpow.pop %v1012
      %v1014 = vmul.f32 %v954, 1.442695
      %v1015 = vpow.pop %v1014
      %v1016 = vmul.f32 %v955, 1.442695
      %v1017 = vpow.pop %v1016
      %v1018 = vmul.f32 %v956, 1.442695
      %v1019 = vpow.pop %v1018
      %v1020 = vmul.f32 %v957, 1.442695
      %v1021 = vpow.pop %v1020
      %v1022 = vadd.f32 %v959, 1.0
      %v1023 = vadd.f32 %v961, 1.0
      %v1024 = vadd.f32 %v963, 1.0
      %v1025 = vadd.f32 %v965, 1.0
      %v1026 = vadd.f32 %v967, 1.0
      %v1027 = vadd.f32 %v969, 1.0
      %v1028 = vadd.f32 %v971, 1.0
      %v1029 = vadd.f32 %v973, 1.0
      %v1030 = vadd.f32 %v975, 1.0
      %v1031 = vadd.f32 %v977, 1.0
      %v1032 = vadd.f32 %v979, 1.0
      %v1033 = vadd.f32 %v981, 1.0
      %v1034 = vadd.f32 %v983, 1.0
      %v1035 = vadd.f32 %v985, 1.0
      %v1036 = vadd.f32 %v987, 1.0
      %v1037 = vadd.f32 %v989, 1.0
      %v1038 = vadd.f32 %v991, 1.0
      %v1039 = vadd.f32 %v993, 1.0
      %v1040 = vadd.f32 %v995, 1.0
      %v1041 = vadd.f32 %v997, 1.0
      %v1042 = vadd.f32 %v999, 1.0
      %v1043 = vadd.f32 %v1001, 1.0
      %v1044 = vadd.f32 %v1003, 1.0
      %v1045 = vadd.f32 %v1005, 1.0
      %v1046 = vadd.f32 %v1007, 1.0
      %v1047 = vadd.f32 %v1009, 1.0
      %v1048 = vadd.f32 %v1011, 1.0
      %v1049 = vadd.f32 %v1013, 1.0
      %v1050 = vadd.f32 %v1015, 1.0
      %v1051 = vadd.f32 %v1017, 1.0
      %v1052 = vadd.f32 %v1019, 1.0
      %v1053 = vadd.f32 %v1021, 1.0
      %v1054 = vrcp.pop %v1022
      %v1055 = vrcp.pop %v1023
      %v1056 = vrcp.pop %v1024
      %v1057 = vrcp.pop %v1025
      %v1058 = vrcp.pop %v1026
      %v1059 = vrcp.pop %v1027
      %v1060 = vrcp.pop %v1028
      %v1061 = vrcp.pop %v1029
      %v1062 = vrcp.pop %v1030
      %v1063 = vrcp.pop %v1031
      %v1064 = vrcp.pop %v1032
      %v1065 = vrcp.pop %v1033
      %v1066 = vrcp.pop %v1034
      %v1067 = vrcp.pop %v1035
      %v1068 = vrcp.pop %v1036
      %v1069 = vrcp.pop %v1037
      %v1070 = vrcp.pop %v1038
      %v1071 = vrcp.pop %v1039
      %v1072 = vrcp.pop %v1040
      %v1073 = vrcp.pop %v1041
      %v1074 = vrcp.pop %v1042
      %v1075 = vrcp.pop %v1043
      %v1076 = vrcp.pop %v1044
      %v1077 = vrcp.pop %v1045
      %v1078 = vrcp.pop %v1046
      %v1079 = vrcp.pop %v1047
      %v1080 = vrcp.pop %v1048
      %v1081 = vrcp.pop %v1049
      %v1082 = vrcp.pop %v1050
      %v1083 = vrcp.pop %v1051
      %v1084 = vrcp.pop %v1052
      %v1085 = vrcp.pop %v1053
      %1086 = vst [vmem:[%s280] sm:$0xff] %v1054
      %1087 = vst [vmem:[%s280 + $0x8] sm:$0xff] %v1055
      %1088 = vst [vmem:[%s280 + $0x10] sm:$0xff] %v1056
      %1089 = vst [vmem:[%s280 + $0x18] sm:$0xff] %v1057
      %1090 = vst [vmem:[%s280 + $0x20] sm:$0xff] %v1058
      %1091 = vst [vmem:[%s280 + $0x28] sm:$0xff] %v1059
      %1092 = vst [vmem:[%s280 + $0x30] sm:$0xff] %v1060
      %1093 = vst [vmem:[%s280 + $0x38] sm:$0xff] %v1061
      %1094 = vst [vmem:[%s280 + $0x40] sm:$0xff] %v1062
      %1095 = vst [vmem:[%s280 + $0x48] sm:$0xff] %v1063
      %1096 = vst [vmem:[%s280 + $0x50] sm:$0xff] %v1064
      %1097 = vst [vmem:[%s280 + $0x58] sm:$0xff] %v1065
      %1098 = vst [vmem:[%s280 + $0x60] sm:$0xff] %v1066
      %1099 = vst [vmem:[%s280 + $0x68] sm:$0xff] %v1067
      %1100 = vst [vmem:[%s280 + $0x70] sm:$0xff] %v1068
      %1101 = vst [vmem:[%s280 + $0x78] sm:$0xff] %v1069
      %1102 = vst [vmem:[%s280 + $0x80] sm:$0xff] %v1070
      %1103 = vst [vmem:[%s280 + $0x88] sm:$0xff] %v1071
      %1104 = vst [vmem:[%s280 + $0x90] sm:$0xff] %v1072
      %1105 = vst [vmem:[%s280 + $0x98] sm:$0xff] %v1073
      %1106 = vst [vmem:[%s280 + $0xa0] sm:$0xff] %v1074
      %1107 = vst [vmem:[%s280 + $0xa8] sm:$0xff] %v1075
      %1108 = vst [vmem:[%s280 + $0xb0] sm:$0xff] %v1076
      %1109 = vst [vmem:[%s280 + $0xb8] sm:$0xff] %v1077
      %1110 = vst [vmem:[%s280 + $0xc0] sm:$0xff] %v1078
      %1111 = vst [vmem:[%s280 + $0xc8] sm:$0xff] %v1079
      %1112 = vst [vmem:[%s280 + $0xd0] sm:$0xff] %v1080
      %1113 = vst [vmem:[%s280 + $0xd8] sm:$0xff] %v1081
      %1114 = vst [vmem:[%s280 + $0xe0] sm:$0xff] %v1082
      %1115 = vst [vmem:[%s280 + $0xe8] sm:$0xff] %v1083
      %1116 = vst [vmem:[%s280 + $0xf0] sm:$0xff] %v1084
      %1117 = vst [vmem:[%s280 + $0xf8] sm:$0xff] %v1085
      %s1118 = smul.u32 32, %s18
      %p1119 = scmp.lt.s32.totalorder %s1118, 63
      %s1120 = scalar_select %p1119, %s1118, 63
      %s1121 = smul.addr %s1120, 8
      %s1122 = scalar_lea.vmem %s7, %s1121
      // Predicated region
      $region49: #{generator_forward.1} parent=47 // pred_check
        %p1123 = pneg %p188
      $region50: #{generator_forward.1} parent=47 // pred_check_branch
        %1125 = sbr.rel (%p1123) target = $region52
      $region51: #{generator_forward.1} parent=47 // pred_region
        %s1126 = smul.u32 32, %s18
      $region52: #{generator_forward.1} parent=47 // pred_fallthru
        _
    $region48: #{generator_forward.1} parent=5 // pred_fallthru
      _
    %p1127 = scmp.le.s32.totalorder 2, %s13
    // Predicated region
    $region53: #{generator_forward.1} parent=5 // pred_check
      %p1128 = pneg %p1127
    $region54: #{generator_forward.1} parent=5 // pred_check_branch
      %1130 = sbr.rel (%p1128) target = $region56
    $region55: #{generator_forward.1} parent=5 // pred_region
      %s1131 = ssub.s32 %s13, 2
      // Predicated region
      $region57: #{generator_forward.1} parent=55 // pred_check
        %p1132 = pneg %p194
      $region58: #{generator_forward.1} parent=55 // pred_check_branch
        %1134 = sbr.rel (%p1132) target = $region60
      $region59: #{generator_forward.1} parent=55 // pred_region
        %s1135 = smul.u32 32, %s19
        %p1136 = scmp.lt.s32.totalorder %s1135, 63
        %s1137 = scalar_select %p1136, %s1135, 63
        %s1138 = smul.addr %s1137, 8
        %s1139 = scalar_lea.vmem %s7, %s1138
      $region60: #{generator_forward.1} parent=55 // pred_fallthru
        _
    $region56: #{generator_forward.1} parent=5 // pred_fallthru
      _
  $region6: #{generator_forward.1} parent=0 // loop_footer
    %s17 = sadd.s32 1, %s13
  $region7: #{generator_forward.1} parent=0 // loop_footer_branch
    %12 = sbr.rel target = $region3
  $region8: #{generator_forward.1} parent=0 // loop_exit
    _

</llo_original>
